<compile_context>
chip_gen: v7x
topology: tpu7x:2x2x1
jax: 0.10.0
libtpu: 0.0.40
codegen_flags: <defaults>
</compile_context>

<pallas_src>
import functools

import jax
import jax.numpy as jnp
from jax.experimental import pallas as pl
from jax.experimental.pallas import tpu as pltpu

D_IN = 3
D_H = 64
D_OUT = 28 * 28        # 784
D_OUT_PAD = 7 * 128    # 896 — lane-dense (multiple of 128) output width


def _round_up(n, m):
    return ((n + m - 1) // m) * m


def decoder_kernel(x_ref, w1_ref, b1_ref, w2_ref, b2_ref, o_ref):
    # Layer 1: (TB, 3) @ (3, 64) + b1, ReLU.  K=3 gives near-zero MXU
    # utilization, but its cost is negligible next to the (TB, 896) f32
    # writeback, so we accept the MXU push/pop rather than hand-rolling FMAs.
    h = jnp.dot(x_ref[...], w1_ref[...], preferred_element_type=jnp.float32)
    h = jnp.maximum(h + b1_ref[...], 0.0)          # bias (1, 64) broadcasts
    # Layer 2: (TB, 64) @ (64, 896) + b2 (zero-padded lane-dense columns).
    y = jnp.dot(h, w2_ref[...], preferred_element_type=jnp.float32)
    o_ref[...] = (y + b2_ref[...]).astype(o_ref.dtype)


@functools.partial(jax.jit, static_argnames=("block_b",))
def decoder_forward(x, w1, b1, w2, b2, *, block_b=512):
    """x: (B, 3) f32 -> (B, 784) f32."""
    B = x.shape[0]

    # Zero-pad layer-2 weights/bias to the lane-dense width (extra columns
    # produce zeros and are sliced off below, so semantics are unchanged).
    w2p = jnp.pad(w2, ((0, 0), (0, D_OUT_PAD - D_OUT)))
    b2p = jnp.pad(b2, ((0, 0), (0, D_OUT_PAD - D_OUT)))

    # Batch tile: multiple of 8 (sublane), capped at block_b (<=1024 keeps the
    # double-buffered footprint small even on v7x's 64 MiB VMEM).
    tb = min(block_b, _round_up(B, 8))
    b_pad = _round_up(B, tb)
    if b_pad != B:
        x = jnp.pad(x, ((0, b_pad - B), (0, 0)))

    grid = (b_pad // tb,)

    out = pl.pallas_call(
        decoder_kernel,
        out_shape=jax.ShapeDtypeStruct((b_pad, D_OUT_PAD), jnp.float32),
        grid=grid,
        in_specs=[
            # Batch-tiled activation block — double-buffered across the grid.
            pl.BlockSpec((tb, D_IN), lambda i: (i, 0)),
            # Weights / biases: constant index map -> VMEM-resident.
            pl.BlockSpec((D_IN, D_H), lambda i: (0, 0)),
            pl.BlockSpec((1, D_H), lambda i: (0, 0)),
            pl.BlockSpec((D_H, D_OUT_PAD), lambda i: (0, 0)),
            pl.BlockSpec((1, D_OUT_PAD), lambda i: (0, 0)),
        ],
        out_specs=pl.BlockSpec((tb, D_OUT_PAD), lambda i: (i, 0)),
        compiler_params=pltpu.CompilerParams(
            dimension_semantics=("parallel",),   # megacore sharding on v7x
        ),
    )(x, w1, b1, w2p, b2p)

    return out[:B, :D_OUT]


def init_params(key):
    """Deterministic init mimicking PyTorch Linear default (+/- 1/sqrt(fan_in))."""
    k1, k2, k3, k4 = jax.random.split(key, 4)
    bound1 = 1.0 / jnp.sqrt(3.0)
    bound2 = 1.0 / jnp.sqrt(64.0)
    # Stored as (in, out) so the kernel computes x @ W + b.
    w1 = jax.random.uniform(k1, (D_IN, D_H), jnp.float32, -bound1, bound1)
    b1 = jax.random.uniform(k2, (1, D_H), jnp.float32, -bound1, bound1)
    w2 = jax.random.uniform(k3, (D_H, D_OUT), jnp.float32, -bound2, bound2)
    b2 = jax.random.uniform(k4, (1, D_OUT), jnp.float32, -bound2, bound2)
    return w1, b1, w2, b2


if __name__ == "__main__":
    key = jax.random.PRNGKey(0)
    k_in, k_params = jax.random.split(key)

    B = 8  # small demo batch (not a multiple of TB -> exercises the pad path)
    x = jax.random.normal(k_in, (B, D_IN), jnp.float32)
    w1, b1, w2, b2 = init_params(k_params)

    out = decoder_forward(x, w1, b1, w2, b2)
    out = jax.block_until_ready(out)

    # Pure-JAX reference check.
    ref = jnp.maximum(x @ w1 + b1, 0.0) @ w2 + b2
    assert out.shape == (B, D_OUT), out.shape
    assert jnp.allclose(out, ref, atol=1e-5, rtol=1e-5), "mismatch vs reference"

    print("KERNEL_OK")
</pallas_src>

<mosaic_0001>
module attributes {stable_mosaic.version = 11 : i64} {
  func.func @decoder_kernel(%arg0: i32, %arg1: memref<8x3xf32, #tpu.memory_space<vmem>>, %arg2: memref<3x64xf32, #tpu.memory_space<vmem>>, %arg3: memref<1x64xf32, #tpu.memory_space<vmem>>, %arg4: memref<64x896xf32, #tpu.memory_space<vmem>>, %arg5: memref<1x896xf32, #tpu.memory_space<vmem>>, %arg6: memref<8x896xf32, #tpu.memory_space<vmem>>) attributes {dimension_semantics = [#tpu.dimension_semantics<parallel>], iteration_bounds = array<i64: 1>, scalar_prefetch = 0 : i64, scratch_operands = 0 : i64, tpu.core_type = #tpu.core_type<tc>, window_params = [{transform_indices = @transform_0, window_bounds = array<i64: 8, 3>}, {pipeline_mode = #tpu.pipeline_mode<synchronous>, transform_indices = @transform_1, window_bounds = array<i64: 3, 64>}, {pipeline_mode = #tpu.pipeline_mode<synchronous>, transform_indices = @transform_2, window_bounds = array<i64: 1, 64>}, {pipeline_mode = #tpu.pipeline_mode<synchronous>, transform_indices = @transform_3, window_bounds = array<i64: 64, 896>}, {pipeline_mode = #tpu.pipeline_mode<synchronous>, transform_indices = @transform_4, window_bounds = array<i64: 1, 896>}, {transform_indices = @transform_5, window_bounds = array<i64: 8, 896>}]} {
    %c0 = arith.constant 0 : index
    %c0_0 = arith.constant 0 : index
    %0 = vector.load %arg1[%c0, %c0_0] : memref<8x3xf32, #tpu.memory_space<vmem>>, vector<8x3xf32>
    %c0_1 = arith.constant 0 : index
    %c0_2 = arith.constant 0 : index
    %1 = vector.load %arg2[%c0_1, %c0_2] : memref<3x64xf32, #tpu.memory_space<vmem>>, vector<3x64xf32>
    %cst = arith.constant dense<0.000000e+00> : vector<8x64xf32>
    %2 = tpu.matmul %0, %1, %cst {dimension_numbers = #tpu.dot_dimension_numbers<[1], [0], [0], [1], [0, 0, 1, 1], [], []>} : vector<8x3xf32>, vector<3x64xf32>, vector<8x64xf32> -> vector<8x64xf32>
    %c0_3 = arith.constant 0 : index
    %c0_4 = arith.constant 0 : index
    %3 = vector.load %arg3[%c0_3, %c0_4] : memref<1x64xf32, #tpu.memory_space<vmem>>, vector<1x64xf32>
    %4 = vector.broadcast %3 : vector<1x64xf32> to vector<8x64xf32>
    %5 = arith.addf %2, %4 : vector<8x64xf32>
    %cst_5 = arith.constant 0.000000e+00 : f32
    %6 = vector.broadcast %cst_5 : f32 to vector<8x64xf32>
    %7 = arith.maximumf %5, %6 : vector<8x64xf32>
    %c0_6 = arith.constant 0 : index
    %c0_7 = arith.constant 0 : index
    %8 = vector.load %arg4[%c0_6, %c0_7] : memref<64x896xf32, #tpu.memory_space<vmem>>, vector<64x896xf32>
    %cst_8 = arith.constant dense<0.000000e+00> : vector<8x896xf32>
    %9 = tpu.matmul %7, %8, %cst_8 {dimension_numbers = #tpu.dot_dimension_numbers<[1], [0], [0], [1], [0, 0, 1, 1], [], []>} : vector<8x64xf32>, vector<64x896xf32>, vector<8x896xf32> -> vector<8x896xf32>
    %c0_9 = arith.constant 0 : index
    %c0_10 = arith.constant 0 : index
    %10 = vector.load %arg5[%c0_9, %c0_10] : memref<1x896xf32, #tpu.memory_space<vmem>>, vector<1x896xf32>
    %11 = vector.broadcast %10 : vector<1x896xf32> to vector<8x896xf32>
    %12 = arith.addf %9, %11 : vector<8x896xf32>
    %c0_11 = arith.constant 0 : index
    %c0_12 = arith.constant 0 : index
    %13 = vector.load %arg6[%c0_11, %c0_12] : memref<8x896xf32, #tpu.memory_space<vmem>>, vector<8x896xf32>
    tpu.vector_store %arg6[%c0_11, %c0_12], %12 {strides = array<i32>} : memref<8x896xf32, #tpu.memory_space<vmem>>, vector<8x896xf32>,
    return
  }
  func.func @transform_0(%arg0: i32) -> (i32, i32) {
    %c0_i32 = arith.constant 0 : i32
    %c0_i32_0 = arith.constant 0 : i32
    return %arg0, %c0_i32 : i32, i32
  }
  func.func @transform_1(%arg0: i32) -> (i32, i32) {
    %c0_i32 = arith.constant 0 : i32
    %c0_i32_0 = arith.constant 0 : i32
    %c0_i32_1 = arith.constant 0 : i32
    return %c0_i32, %c0_i32_0 : i32, i32
  }
  func.func @transform_2(%arg0: i32) -> (i32, i32) {
    %c0_i32 = arith.constant 0 : i32
    %c0_i32_0 = arith.constant 0 : i32
    %c0_i32_1 = arith.constant 0 : i32
    return %c0_i32, %c0_i32_0 : i32, i32
  }
  func.func @transform_3(%arg0: i32) -> (i32, i32) {
    %c0_i32 = arith.constant 0 : i32
    %c0_i32_0 = arith.constant 0 : i32
    %c0_i32_1 = arith.constant 0 : i32
    return %c0_i32, %c0_i32_0 : i32, i32
  }
  func.func @transform_4(%arg0: i32) -> (i32, i32) {
    %c0_i32 = arith.constant 0 : i32
    %c0_i32_0 = arith.constant 0 : i32
    %c0_i32_1 = arith.constant 0 : i32
    return %c0_i32, %c0_i32_0 : i32, i32
  }
  func.func @transform_5(%arg0: i32) -> (i32, i32) {
    %c0_i32 = arith.constant 0 : i32
    %c0_i32_0 = arith.constant 0 : i32
    return %arg0, %c0_i32 : i32, i32
  }
}

</mosaic_0001>

<llo_original>
// kernel: decoder_forward.1
$region0: #{decoder_forward.1}
  #allocation0 [shape = 'u32[]', space=smem, size = 0x4, offset = 0x4, fixed_abs, tag = 'smem constant byte address 0x4 - core index']
  #allocation1 [shape = 'u32[144,128]{1,0:T(1,128)}', space=vmem, size = 0x12000, scoped, tag = 'internal scratch']
  %s0 = inlined_call_operand.vmem [shape: f32[8,3], index: 0, kind: input, shape index: {}]
  %s1 = inlined_call_operand.vmem [shape: f32[3,64], index: 1, kind: input, shape index: {}]
  %s2 = inlined_call_operand.vmem [shape: f32[1,64], index: 2, kind: input, shape index: {}]
  %s3 = inlined_call_operand.vmem [shape: f32[64,896], index: 3, kind: input, shape index: {}]
  %s4 = inlined_call_operand.vmem [shape: f32[1,896], index: 4, kind: input, shape index: {}]
  %s5 = inlined_call_operand.hbm [shape: f32[8,896], index: 5, kind: output, shape index: {}]
  %s6 = sld [smem:[#allocation0]]
  $region30: #{decoder_forward.1} parent=0
    _
  %s8 = ssub.s32 1, %s6
  %s9 = scalar_select 0, %s8, %s6
  $region1: #{decoder_forward.1} parent=0
    #allocation2 [shape = 'u8[28672]{0}', space=vmem, size = 0x7000, scoped, tag = 'output window, operand 0, single buffered']
    #allocation3 [shape = 's32[1]{0}', space=sflag, size = 0x4, scoped, tag = 'scoped memory for decoder_forward.1']
    %10 = vsyncpa [#allocation3], 0
    // Predicated region
    $region2: #{decoder_forward.1} parent=1 // pred_check
      _
    $region3: #{decoder_forward.1} parent=1 // pred_check_branch
      %12 = sbr.rel (0) target = $region5
    $region4: #{decoder_forward.1} parent=1 // pred_region
      _
    $region5: #{decoder_forward.1} parent=1 // pred_fallthru
      _
    // Predicated region
    $region6: #{decoder_forward.1} parent=1 // pred_check
      _
    $region7: #{decoder_forward.1} parent=1 // pred_check_branch
      %14 = sbr.rel (0) target = $region9
    $region8: #{decoder_forward.1} parent=1 // pred_region
      _
    $region9: #{decoder_forward.1} parent=1 // pred_fallthru
      _
    // Predicated region
    $region10: #{decoder_forward.1} parent=1 // pred_check
      _
    $region11: #{decoder_forward.1} parent=1 // pred_check_branch
      %16 = sbr.rel (0) target = $region13
    $region12: #{decoder_forward.1} parent=1 // pred_region
      _
    $region13: #{decoder_forward.1} parent=1 // pred_fallthru
      _
    // Predicated region
    $region14: #{decoder_forward.1} parent=1 // pred_check
      _
    $region15: #{decoder_forward.1} parent=1 // pred_check_branch
      %18 = sbr.rel (0) target = $region17
    $region16: #{decoder_forward.1} parent=1 // pred_region
      _
    $region17: #{decoder_forward.1} parent=1 // pred_fallthru
      _
    // Predicated region
    $region18: #{decoder_forward.1} parent=1 // pred_check
      _
    $region19: #{decoder_forward.1} parent=1 // pred_check_branch
      %20 = sbr.rel (0) target = $region21
    $region20: #{decoder_forward.1} parent=1 // pred_region
      _
    $region21: #{decoder_forward.1} parent=1 // pred_fallthru
      _
    %v21 = vld [vmem:[%s0] sm:$0xff]
    %v22 = vld [vmem:[%s1] sm:$0x7]
    %v23 = vld [vmem:[%s2] sm:$0x1]
    %v25 = vlaneseq
    %v26 = vshrl.u32 %v25, 7
    %v27 = vsub.s32 0, %v26
    %v28 = vrot.slane %v23, %v27
    %vm30 = vcmask 23552
    %v32 = vsel %vm30, %v21, 0
    %vm34 = vcmask 1042432
    %v36 = vsel %vm34, %v22, 0
    %38 = vmatprep.subr.mxu0 0.0
    %39 = vmatpush1.msra.mxu0 %v36
    %40 = vmatprep.subr.mxu0 0.0
    %41 = vmatpush1.msra.mxu0 0.0
    %42 = vmatprep.subr.mxu0 0.0
    %43 = vmatpush1.msra.mxu0 0.0
    %44 = vmatprep.subr.mxu0 0.0
    %45 = vmatpush1.msra.mxu0 0.0
    %46 = vmatprep.subr.mxu0 0.0
    %47 = vmatpush1.msra.mxu0 0.0
    %48 = vmatprep.subr.mxu0 0.0
    %49 = vmatpush1.msra.mxu0 0.0
    %50 = vmatprep.subr.mxu0 0.0
    %51 = vmatpush1.msra.mxu0 0.0
    %52 = vmatprep.subr.mxu0 0.0
    %53 = vmatpush1.msra.mxu0 0.0
    %54 = vmatprep.subr.mxu0 0.0
    %55 = vmatpush1.msra.mxu0 0.0
    %56 = vmatprep.subr.mxu0 0.0
    %57 = vmatpush1.msra.mxu0 0.0
    %58 = vmatprep.subr.mxu0 0.0
    %59 = vmatpush1.msra.mxu0 0.0
    %60 = vmatprep.subr.mxu0 0.0
    %61 = vmatpush1.msra.mxu0 0.0
    %62 = vmatprep.subr.mxu0 0.0
    %63 = vmatpush1.msra.mxu0 0.0
    %64 = vmatprep.subr.mxu0 0.0
    %65 = vmatpush1.msra.mxu0 0.0
    %66 = vmatprep.subr.mxu0 0.0
    %67 = vmatpush1.msra.mxu0 0.0
    %68 = vmatprep.subr.mxu0 0.0
    %69 = vmatpush1.msra.mxu0 0.0
    %70 = vmatprep.subr.mxu0 0.0
    %71 = vmatpush1.msra.mxu0 0.0
    %72 = vmatprep.subr.mxu0 0.0
    %73 = vmatpush1.msra.mxu0 0.0
    %74 = vmatprep.subr.mxu0 0.0
    %75 = vmatpush1.msra.mxu0 0.0
    %76 = vmatprep.subr.mxu0 0.0
    %77 = vmatpush1.msra.mxu0 0.0
    %78 = vmatprep.subr.mxu0 0.0
    %79 = vmatpush1.msra.mxu0 0.0
    %80 = vmatprep.subr.mxu0 0.0
    %81 = vmatpush1.msra.mxu0 0.0
    %82 = vmatprep.subr.mxu0 0.0
    %83 = vmatpush1.msra.mxu0 0.0
    %84 = vmatprep.subr.mxu0 0.0
    %85 = vmatpush1.msra.mxu0 0.0
    %86 = vmatprep.subr.mxu0 0.0
    %87 = vmatpush1.msra.mxu0 0.0
    %88 = vmatprep.subr.mxu0 0.0
    %89 = vmatpush1.msra.mxu0 0.0
    %90 = vmatprep.subr.mxu0 0.0
    %91 = vmatpush1.msra.mxu0 0.0
    %92 = vmatprep.subr.mxu0 0.0
    %93 = vmatpush1.msra.mxu0 0.0
    %94 = vmatprep.subr.mxu0 0.0
    %95 = vmatpush1.msra.mxu0 0.0
    %96 = vmatprep.subr.mxu0 0.0
    %97 = vmatpush1.msra.mxu0 0.0
    %98 = vmatprep.subr.mxu0 0.0
    %99 = vmatpush1.msra.mxu0 0.0
    %100 = vmatprep.subr.mxu0 0.0
    %101 = vmatpush1.msra.mxu0 0.0
    %102 = vmatprep.mubr.f32.mxu0 0.0
    %103 = vmatmul.mubr.f32.gmra.mrb[0].mxu0 %v32
    %v104 = vpop.f32.mrb[0].mxu0
    %v105 = vadd.f32 %v28, %v104
    %v106 = vpop.f32.mrb[0].mxu0
    %107 = vdwg.mxu0
    %v108 = vmax.f32 %v105, 0.0
    %v109 = vld [vmem:[%s3] sm:$0xff]
    %v110 = vld [vmem:[%s3 + $0x8] sm:$0xff]
    %v111 = vld [vmem:[%s3 + $0x10] sm:$0xff]
    %v112 = vld [vmem:[%s3 + $0x18] sm:$0xff]
    %v113 = vld [vmem:[%s3 + $0x20] sm:$0xff]
    %v114 = vld [vmem:[%s3 + $0x28] sm:$0xff]
    %v115 = vld [vmem:[%s3 + $0x30] sm:$0xff]
    %v116 = vld [vmem:[%s3 + $0x38] sm:$0xff]
    %v117 = vld [vmem:[%s3 + $0x40] sm:$0xff]
    %v118 = vld [vmem:[%s3 + $0x48] sm:$0xff]
    %v119 = vld [vmem:[%s3 + $0x50] sm:$0xff]
    %v120 = vld [vmem:[%s3 + $0x58] sm:$0xff]
    %v121 = vld [vmem:[%s3 + $0x60] sm:$0xff]
    %v122 = vld [vmem:[%s3 + $0x68] sm:$0xff]
    %v123 = vld [vmem:[%s3 + $0x70] sm:$0xff]
    %v124 = vld [vmem:[%s3 + $0x78] sm:$0xff]
    %v125 = vld [vmem:[%s3 + $0x80] sm:$0xff]
    %v126 = vld [vmem:[%s3 + $0x88] sm:$0xff]
    %v127 = vld [vmem:[%s3 + $0x90] sm:$0xff]
    %v128 = vld [vmem:[%s3 + $0x98] sm:$0xff]
    %v129 = vld [vmem:[%s3 + $0xa0] sm:$0xff]
    %v130 = vld [vmem:[%s3 + $0xa8] sm:$0xff]
    %v131 = vld [vmem:[%s3 + $0xb0] sm:$0xff]
    %v132 = vld [vmem:[%s3 + $0xb8] sm:$0xff]
    %v133 = vld [vmem:[%s3 + $0xc0] sm:$0xff]
    %v134 = vld [vmem:[%s3 + $0xc8] sm:$0xff]
    %v135 = vld [vmem:[%s3 + $0xd0] sm:$0xff]
    %v136 = vld [vmem:[%s3 + $0xd8] sm:$0xff]
    %v137 = vld [vmem:[%s3 + $0xe0] sm:$0xff]
    %v138 = vld [vmem:[%s3 + $0xe8] sm:$0xff]
    %v139 = vld [vmem:[%s3 + $0xf0] sm:$0xff]
    %v140 = vld [vmem:[%s3 + $0xf8] sm:$0xff]
    %v141 = vld [vmem:[%s3 + $0x100] sm:$0xff]
    %v142 = vld [vmem:[%s3 + $0x108] sm:$0xff]
    %v143 = vld [vmem:[%s3 + $0x110] sm:$0xff]
    %v144 = vld [vmem:[%s3 + $0x118] sm:$0xff]
    %v145 = vld [vmem:[%s3 + $0x120] sm:$0xff]
    %v146 = vld [vmem:[%s3 + $0x128] sm:$0xff]
    %v147 = vld [vmem:[%s3 + $0x130] sm:$0xff]
    %v148 = vld [vmem:[%s3 + $0x138] sm:$0xff]
    %v149 = vld [vmem:[%s3 + $0x140] sm:$0xff]
    %v150 = vld [vmem:[%s3 + $0x148] sm:$0xff]
    %v151 = vld [vmem:[%s3 + $0x150] sm:$0xff]
    %v152 = vld [vmem:[%s3 + $0x158] sm:$0xff]
    %v153 = vld [vmem:[%s3 + $0x160] sm:$0xff]
    %v154 = vld [vmem:[%s3 + $0x168] sm:$0xff]
    %v155 = vld [vmem:[%s3 + $0x170] sm:$0xff]
    %v156 = vld [vmem:[%s3 + $0x178] sm:$0xff]
    %v157 = vld [vmem:[%s3 + $0x180] sm:$0xff]
    %v158 = vld [vmem:[%s3 + $0x188] sm:$0xff]
    %v159 = vld [vmem:[%s3 + $0x190] sm:$0xff]
    %v160 = vld [vmem:[%s3 + $0x198] sm:$0xff]
    %v161 = vld [vmem:[%s3 + $0x1a0] sm:$0xff]
    %v162 = vld [vmem:[%s3 + $0x1a8] sm:$0xff]
    %v163 = vld [vmem:[%s3 + $0x1b0] sm:$0xff]
    %v164 = vld [vmem:[%s3 + $0x1b8] sm:$0xff]
    %v165 = vld [vmem:[%s4] sm:$0xff]
    %v167 = vlaneseq
    %v168 = vshrl.u32 %v167, 7
    %v169 = vsub.s32 0, %v168
    %v170 = vrot.slane %v165, %v169
    %v171 = vlaneseq
    %v172 = vshrl.u32 %v171, 7
    %v173 = vsub.s32 1, %v172
    %v174 = vrot.slane %v165, %v173
    %v175 = vlaneseq
    %v176 = vshrl.u32 %v175, 7
    %v177 = vsub.s32 2, %v176
    %v178 = vrot.slane %v165, %v177
    %v179 = vlaneseq
    %v180 = vshrl.u32 %v179, 7
    %v181 = vsub.s32 3, %v180
    %v182 = vrot.slane %v165, %v181
    %v183 = vlaneseq
    %v184 = vshrl.u32 %v183, 7
    %v185 = vsub.s32 4, %v184
    %v186 = vrot.slane %v165, %v185
    %v187 = vlaneseq
    %v188 = vshrl.u32 %v187, 7
    %v189 = vsub.s32 5, %v188
    %v190 = vrot.slane %v165, %v189
    %v191 = vlaneseq
    %v192 = vshrl.u32 %v191, 7
    %v193 = vsub.s32 6, %v192
    %v194 = vrot.slane %v165, %v193
    %vm202 = vcmask 523264
    %v204 = vsel %vm202, %v108, 0
    %206 = vmatprep.subr.mxu0 %v110
    %207 = vmatpush1.msra.mxu0 %v109
    %208 = vmatprep.subr.mxu0 %v117
    %209 = vmatpush1.msra.mxu0 %v116
    %210 = vmatprep.subr.mxu0 %v124
    %211 = vmatpush1.msra.mxu0 %v123
    %212 = vmatprep.subr.mxu0 %v131
    %213 = vmatpush1.msra.mxu0 %v130
    %214 = vmatprep.subr.mxu0 %v138
    %215 = vmatpush1.msra.mxu0 %v137
    %216 = vmatprep.subr.mxu0 %v145
    %217 = vmatpush1.msra.mxu0 %v144
    %218 = vmatprep.subr.mxu0 %v152
    %219 = vmatpush1.msra.mxu0 %v151
    %220 = vmatprep.subr.mxu0 %v159
    %221 = vmatpush1.msra.mxu0 %v158
    %222 = vmatprep.subr.mxu0 0.0
    %223 = vmatpush1.msra.mxu0 0.0
    %224 = vmatprep.subr.mxu0 0.0
    %225 = vmatpush1.msra.mxu0 0.0
    %226 = vmatprep.subr.mxu0 0.0
    %227 = vmatpush1.msra.mxu0 0.0
    %228 = vmatprep.subr.mxu0 0.0
    %229 = vmatpush1.msra.mxu0 0.0
    %230 = vmatprep.subr.mxu0 0.0
    %231 = vmatpush1.msra.mxu0 0.0
    %232 = vmatprep.subr.mxu0 0.0
    %233 = vmatpush1.msra.mxu0 0.0
    %234 = vmatprep.subr.mxu0 0.0
    %235 = vmatpush1.msra.mxu0 0.0
    %236 = vmatprep.subr.mxu0 0.0
    %237 = vmatpush1.msra.mxu0 0.0
    %238 = vmatprep.subr.mxu0 0.0
    %239 = vmatpush1.msra.mxu0 0.0
    %240 = vmatprep.subr.mxu0 0.0
    %241 = vmatpush1.msra.mxu0 0.0
    %242 = vmatprep.subr.mxu0 0.0
    %243 = vmatpush1.msra.mxu0 0.0
    %244 = vmatprep.subr.mxu0 0.0
    %245 = vmatpush1.msra.mxu0 0.0
    %246 = vmatprep.subr.mxu0 0.0
    %247 = vmatpush1.msra.mxu0 0.0
    %248 = vmatprep.subr.mxu0 0.0
    %249 = vmatpush1.msra.mxu0 0.0
    %250 = vmatprep.subr.mxu0 0.0
    %251 = vmatpush1.msra.mxu0 0.0
    %252 = vmatprep.subr.mxu0 0.0
    %253 = vmatpush1.msra.mxu0 0.0
    %254 = vmatprep.subr.mxu0 0.0
    %255 = vmatpush1.msra.mxu0 0.0
    %256 = vmatprep.subr.mxu0 0.0
    %257 = vmatpush1.msra.mxu0 0.0
    %258 = vmatprep.subr.mxu0 0.0
    %259 = vmatpush1.msra.mxu0 0.0
    %260 = vmatprep.subr.mxu0 0.0
    %261 = vmatpush1.msra.mxu0 0.0
    %262 = vmatprep.subr.mxu0 0.0
    %263 = vmatpush1.msra.mxu0 0.0
    %264 = vmatprep.subr.mxu0 0.0
    %265 = vmatpush1.msra.mxu0 0.0
    %266 = vmatprep.subr.mxu0 0.0
    %267 = vmatpush1.msra.mxu0 0.0
    %268 = vmatprep.subr.mxu0 0.0
    %269 = vmatpush1.msra.mxu0 0.0
    %270 = vmatprep.mubr.f32.mxu0 0.0
    %271 = vmatmul.mubr.f32.gmra.mrb[0].mxu0 %v204
    %v272 = vpop.f32.mrb[0].mxu0
    %v273 = vadd.f32 %v170, %v272
    %v274 = vpop.f32.mrb[0].mxu0
    %v275 = vadd.f32 %v174, %v274
    %276 = vdwg.mxu0
    %277 = vmatprep.subr.mxu0 %v112
    %278 = vmatpush1.msra.mxu0 %v111
    %279 = vmatprep.subr.mxu0 %v119
    %280 = vmatpush1.msra.mxu0 %v118
    %281 = vmatprep.subr.mxu0 %v126
    %282 = vmatpush1.msra.mxu0 %v125
    %283 = vmatprep.subr.mxu0 %v133
    %284 = vmatpush1.msra.mxu0 %v132
    %285 = vmatprep.subr.mxu0 %v140
    %286 = vmatpush1.msra.mxu0 %v139
    %287 = vmatprep.subr.mxu0 %v147
    %288 = vmatpush1.msra.mxu0 %v146
    %289 = vmatprep.subr.mxu0 %v154
    %290 = vmatpush1.msra.mxu0 %v153
    %291 = vmatprep.subr.mxu0 %v161
    %292 = vmatpush1.msra.mxu0 %v160
    %293 = vmatprep.subr.mxu0 0.0
    %294 = vmatpush1.msra.mxu0 0.0
    %295 = vmatprep.subr.mxu0 0.0
    %296 = vmatpush1.msra.mxu0 0.0
    %297 = vmatprep.subr.mxu0 0.0
    %298 = vmatpush1.msra.mxu0 0.0
    %299 = vmatprep.subr.mxu0 0.0
    %300 = vmatpush1.msra.mxu0 0.0
    %301 = vmatprep.subr.mxu0 0.0
    %302 = vmatpush1.msra.mxu0 0.0
    %303 = vmatprep.subr.mxu0 0.0
    %304 = vmatpush1.msra.mxu0 0.0
    %305 = vmatprep.subr.mxu0 0.0
    %306 = vmatpush1.msra.mxu0 0.0
    %307 = vmatprep.subr.mxu0 0.0
    %308 = vmatpush1.msra.mxu0 0.0
    %309 = vmatprep.subr.mxu0 0.0
    %310 = vmatpush1.msra.mxu0 0.0
    %311 = vmatprep.subr.mxu0 0.0
    %312 = vmatpush1.msra.mxu0 0.0
    %313 = vmatprep.subr.mxu0 0.0
    %314 = vmatpush1.msra.mxu0 0.0
    %315 = vmatprep.subr.mxu0 0.0
    %316 = vmatpush1.msra.mxu0 0.0
    %317 = vmatprep.subr.mxu0 0.0
    %318 = vmatpush1.msra.mxu0 0.0
    %319 = vmatprep.subr.mxu0 0.0
    %320 = vmatpush1.msra.mxu0 0.0
    %321 = vmatprep.subr.mxu0 0.0
    %322 = vmatpush1.msra.mxu0 0.0
    %323 = vmatprep.subr.mxu0 0.0
    %324 = vmatpush1.msra.mxu0 0.0
    %325 = vmatprep.subr.mxu0 0.0
    %326 = vmatpush1.msra.mxu0 0.0
    %327 = vmatprep.subr.mxu0 0.0
    %328 = vmatpush1.msra.mxu0 0.0
    %329 = vmatprep.subr.mxu0 0.0
    %330 = vmatpush1.msra.mxu0 0.0
    %331 = vmatprep.subr.mxu0 0.0
    %332 = vmatpush1.msra.mxu0 0.0
    %333 = vmatprep.subr.mxu0 0.0
    %334 = vmatpush1.msra.mxu0 0.0
    %335 = vmatprep.subr.mxu0 0.0
    %336 = vmatpush1.msra.mxu0 0.0
    %337 = vmatprep.subr.mxu0 0.0
    %338 = vmatpush1.msra.mxu0 0.0
    %339 = vmatprep.subr.mxu0 0.0
    %340 = vmatpush1.msra.mxu0 0.0
    %341 = vmatprep.mubr.f32.mxu0 0.0
    %342 = vmatmul.mubr.f32.gmra.mrb[0].mxu0 %v204
    %v343 = vpop.f32.mrb[0].mxu0
    %v344 = vadd.f32 %v178, %v343
    %v345 = vpop.f32.mrb[0].mxu0
    %v346 = vadd.f32 %v182, %v345
    %347 = vdwg.mxu0
    %348 = vmatprep.subr.mxu0 %v114
    %349 = vmatpush1.msra.mxu0 %v113
    %350 = vmatprep.subr.mxu0 %v121
    %351 = vmatpush1.msra.mxu0 %v120
    %352 = vmatprep.subr.mxu0 %v128
    %353 = vmatpush1.msra.mxu0 %v127
    %354 = vmatprep.subr.mxu0 %v135
    %355 = vmatpush1.msra.mxu0 %v134
    %356 = vmatprep.subr.mxu0 %v142
    %357 = vmatpush1.msra.mxu0 %v141
    %358 = vmatprep.subr.mxu0 %v149
    %359 = vmatpush1.msra.mxu0 %v148
    %360 = vmatprep.subr.mxu0 %v156
    %361 = vmatpush1.msra.mxu0 %v155
    %362 = vmatprep.subr.mxu0 %v163
    %363 = vmatpush1.msra.mxu0 %v162
    %364 = vmatprep.subr.mxu0 0.0
    %365 = vmatpush1.msra.mxu0 0.0
    %366 = vmatprep.subr.mxu0 0.0
    %367 = vmatpush1.msra.mxu0 0.0
    %368 = vmatprep.subr.mxu0 0.0
    %369 = vmatpush1.msra.mxu0 0.0
    %370 = vmatprep.subr.mxu0 0.0
    %371 = vmatpush1.msra.mxu0 0.0
    %372 = vmatprep.subr.mxu0 0.0
    %373 = vmatpush1.msra.mxu0 0.0
    %374 = vmatprep.subr.mxu0 0.0
    %375 = vmatpush1.msra.mxu0 0.0
    %376 = vmatprep.subr.mxu0 0.0
    %377 = vmatpush1.msra.mxu0 0.0
    %378 = vmatprep.subr.mxu0 0.0
    %379 = vmatpush1.msra.mxu0 0.0
    %380 = vmatprep.subr.mxu0 0.0
    %381 = vmatpush1.msra.mxu0 0.0
    %382 = vmatprep.subr.mxu0 0.0
    %383 = vmatpush1.msra.mxu0 0.0
    %384 = vmatprep.subr.mxu0 0.0
    %385 = vmatpush1.msra.mxu0 0.0
    %386 = vmatprep.subr.mxu0 0.0
    %387 = vmatpush1.msra.mxu0 0.0
    %388 = vmatprep.subr.mxu0 0.0
    %389 = vmatpush1.msra.mxu0 0.0
    %390 = vmatprep.subr.mxu0 0.0
    %391 = vmatpush1.msra.mxu0 0.0
    %392 = vmatprep.subr.mxu0 0.0
    %393 = vmatpush1.msra.mxu0 0.0
    %394 = vmatprep.subr.mxu0 0.0
    %395 = vmatpush1.msra.mxu0 0.0
    %396 = vmatprep.subr.mxu0 0.0
    %397 = vmatpush1.msra.mxu0 0.0
    %398 = vmatprep.subr.mxu0 0.0
    %399 = vmatpush1.msra.mxu0 0.0
    %400 = vmatprep.subr.mxu0 0.0
    %401 = vmatpush1.msra.mxu0 0.0
    %402 = vmatprep.subr.mxu0 0.0
    %403 = vmatpush1.msra.mxu0 0.0
    %404 = vmatprep.subr.mxu0 0.0
    %405 = vmatpush1.msra.mxu0 0.0
    %406 = vmatprep.subr.mxu0 0.0
    %407 = vmatpush1.msra.mxu0 0.0
    %408 = vmatprep.subr.mxu0 0.0
    %409 = vmatpush1.msra.mxu0 0.0
    %410 = vmatprep.subr.mxu0 0.0
    %411 = vmatpush1.msra.mxu0 0.0
    %412 = vmatprep.mubr.f32.mxu0 0.0
    %413 = vmatmul.mubr.f32.gmra.mrb[0].mxu0 %v204
    %v414 = vpop.f32.mrb[0].mxu0
    %v415 = vadd.f32 %v186, %v414
    %v416 = vpop.f32.mrb[0].mxu0
    %v417 = vadd.f32 %v190, %v416
    %418 = vdwg.mxu0
    %419 = vmatprep.subr.mxu0 0.0
    %420 = vmatpush1.msra.mxu0 %v115
    %421 = vmatprep.subr.mxu0 0.0
    %422 = vmatpush1.msra.mxu0 %v122
    %423 = vmatprep.subr.mxu0 0.0
    %424 = vmatpush1.msra.mxu0 %v129
    %425 = vmatprep.subr.mxu0 0.0
    %426 = vmatpush1.msra.mxu0 %v136
    %427 = vmatprep.subr.mxu0 0.0
    %428 = vmatpush1.msra.mxu0 %v143
    %429 = vmatprep.subr.mxu0 0.0
    %430 = vmatpush1.msra.mxu0 %v150
    %431 = vmatprep.subr.mxu0 0.0
    %432 = vmatpush1.msra.mxu0 %v157
    %433 = vmatprep.subr.mxu0 0.0
    %434 = vmatpush1.msra.mxu0 %v164
    %435 = vmatprep.subr.mxu0 0.0
    %436 = vmatpush1.msra.mxu0 0.0
    %437 = vmatprep.subr.mxu0 0.0
    %438 = vmatpush1.msra.mxu0 0.0
    %439 = vmatprep.subr.mxu0 0.0
    %440 = vmatpush1.msra.mxu0 0.0
    %441 = vmatprep.subr.mxu0 0.0
    %442 = vmatpush1.msra.mxu0 0.0
    %443 = vmatprep.subr.mxu0 0.0
    %444 = vmatpush1.msra.mxu0 0.0
    %445 = vmatprep.subr.mxu0 0.0
    %446 = vmatpush1.msra.mxu0 0.0
    %447 = vmatprep.subr.mxu0 0.0
    %448 = vmatpush1.msra.mxu0 0.0
    %449 = vmatprep.subr.mxu0 0.0
    %450 = vmatpush1.msra.mxu0 0.0
    %451 = vmatprep.subr.mxu0 0.0
    %452 = vmatpush1.msra.mxu0 0.0
    %453 = vmatprep.subr.mxu0 0.0
    %454 = vmatpush1.msra.mxu0 0.0
    %455 = vmatprep.subr.mxu0 0.0
    %456 = vmatpush1.msra.mxu0 0.0
    %457 = vmatprep.subr.mxu0 0.0
    %458 = vmatpush1.msra.mxu0 0.0
    %459 = vmatprep.subr.mxu0 0.0
    %460 = vmatpush1.msra.mxu0 0.0
    %461 = vmatprep.subr.mxu0 0.0
    %462 = vmatpush1.msra.mxu0 0.0
    %463 = vmatprep.subr.mxu0 0.0
    %464 = vmatpush1.msra.mxu0 0.0
    %465 = vmatprep.subr.mxu0 0.0
    %466 = vmatpush1.msra.mxu0 0.0
    %467 = vmatprep.subr.mxu0 0.0
    %468 = vmatpush1.msra.mxu0 0.0
    %469 = vmatprep.subr.mxu0 0.0
    %470 = vmatpush1.msra.mxu0 0.0
    %471 = vmatprep.subr.mxu0 0.0
    %472 = vmatpush1.msra.mxu0 0.0
    %473 = vmatprep.subr.mxu0 0.0
    %474 = vmatpush1.msra.mxu0 0.0
    %475 = vmatprep.subr.mxu0 0.0
    %476 = vmatpush1.msra.mxu0 0.0
    %477 = vmatprep.subr.mxu0 0.0
    %478 = vmatpush1.msra.mxu0 0.0
    %479 = vmatprep.subr.mxu0 0.0
    %480 = vmatpush1.msra.mxu0 0.0
    %481 = vmatprep.subr.mxu0 0.0
    %482 = vmatpush1.msra.mxu0 0.0
    %483 = vmatprep.mubr.f32.mxu0 0.0
    %484 = vmatmul.mubr.f32.gmra.mrb[0].mxu0 %v204
    %v485 = vpop.f32.mrb[0].mxu0
    %v486 = vadd.f32 %v194, %v485
    %v487 = vpop.f32.mrb[0].mxu0
    %488 = vdwg.mxu0
    %489 = vst [vmem:[#allocation2] sm:$0xff] %v273
    %490 = vst [vmem:[#allocation2 + $0x8] sm:$0xff] %v275
    %491 = vst [vmem:[#allocation2 + $0x10] sm:$0xff] %v344
    %492 = vst [vmem:[#allocation2 + $0x18] sm:$0xff] %v346
    %493 = vst [vmem:[#allocation2 + $0x20] sm:$0xff] %v415
    %494 = vst [vmem:[#allocation2 + $0x28] sm:$0xff] %v417
    %495 = vst [vmem:[#allocation2 + $0x30] sm:$0xff] %v486
    // Predicated region
    $region22: #{decoder_forward.1} parent=1 // pred_check
      _
    $region23: #{decoder_forward.1} parent=1 // pred_check_branch
      %497 = sbr.rel (0) target = $region25
    $region24: #{decoder_forward.1} parent=1 // pred_region
      %s499 = ssub.s32 896, 896
      %500 = vsyncadd [#allocation3], %s499
      %s502 = sshll.u32 [#allocation2], 4
      %s503 = int_to_ptr.vmem [resolvable:$true] %s502
      %505 = dma.vmem_to_hbm [thread:$0]  %s503, 896, %s5, [#allocation3]
    $region25: #{decoder_forward.1} parent=1 // pred_fallthru
      _
    // Predicated region
    $region26: #{decoder_forward.1} parent=1 // pred_check
      _
    $region27: #{decoder_forward.1} parent=1 // pred_check_branch
      %507 = sbr.rel (0) target = $region29
    $region28: #{decoder_forward.1} parent=1 // pred_region
      %508 = dma.done [#allocation3], 896
    $region29: #{decoder_forward.1} parent=1 // pred_fallthru
      _
    %509 = vsyncpa [#allocation3], 1

</llo_original>
